<compile_context>
chip_gen: v7x
topology: tpu7x:2x2x1
jax: 0.10.0
libtpu: 0.0.40
codegen_flags: <defaults>
</compile_context>

<pallas_src>
import functools

import jax
import jax.numpy as jnp
from jax.experimental import pallas as pl
from jax.experimental.pallas import tpu as pltpu

BN_EPS = 1e-5


def _physical_vmem_bytes():
    """Generation-aware physical VMEM (128 MiB v5e/v6e, 64 MiB per TC on v7x)."""
    try:
        info = pltpu.get_tpu_info()
        cap = int(getattr(info, "vmem_capacity_bytes", 0))
        if cap > 0:
            return cap
    except Exception:
        pass
    return 64 * 1024 * 1024  # conservative fallback (v7x per-TensorCore VMEM)


def _pick_batch_block(n, l_out):
    """Largest divisor of N whose folded lane width Nb*L_out stays <= ~2048 lanes."""
    target = max(1, 2048 // max(l_out, 1))
    nb = max(1, min(n, target))
    while n % nb:
        nb -= 1
    return nb


def _convblock_kernel(x_ref, w_ref, gamma_ref, beta_ref, o_ref,
                      y_acc, sum_s, scale_s, shift_s,
                      *, K, L_out, Nb, NB, stride, inv_count):
    """Fused Conv1d + BatchNorm1d(batch stats) + hswish.

    grid = (phase, batch_block):
      phase 0        : conv for Nb batch elements (ONE wide matmul, contraction K*C_in,
                       lanes Nb*L_out) -> y_acc[b] (VMEM), accumulate channel sums.
      phase 1 (b==0) : finalize mean / centered variance (chunked fori over blocks) and
                       fold BN into (scale, shift).
      phase 1        : out = hswish(scale * y_acc[b] + shift), written per batch element.
    """
    p = pl.program_id(0)
    b = pl.program_id(1)
    C_out = o_ref.shape[1]

    @pl.when(jnp.logical_and(p == 0, b == 0))
    def _init():
        sum_s[...] = jnp.zeros_like(sum_s)

    @pl.when(p == 0)
    def _conv():
        # Stacked MXU operand (K*C_in, Nb*L_out): rows tap-major, columns batch-major.
        col_blocks = []
        for n in range(Nb):                                 # static, small
            taps = []
            for k in range(K):                              # static, small
                if stride == 1:
                    taps.append(x_ref[n, :, k:k + L_out])
                else:
                    # in-kernel strided lane read: indices k, k+stride, ...
                    taps.append(x_ref[n, :, pl.ds(k, L_out, stride=stride)])
            col_blocks.append(jnp.concatenate(taps, axis=0) if K > 1 else taps[0])
        x_stack = jnp.concatenate(col_blocks, axis=1) if Nb > 1 else col_blocks[0]

        # Single wide matmul: (C_out, K*C_in) @ (K*C_in, Nb*L_out), f32 accumulation.
        y = jnp.dot(w_ref[...], x_stack, preferred_element_type=jnp.float32)
        y_acc[b] = y
        sum_s[...] += jnp.sum(y, axis=1, keepdims=True)

    @pl.when(jnp.logical_and(p == 1, b == 0))
    def _finalize_stats():
        mean = sum_s[...] * inv_count                       # (C_out, 1)

        # Chunked centered-variance pass: one (C_out, Nb*L_out) slab live at a time.
        def body(i, acc):
            c = y_acc[i] - mean
            return acc + jnp.sum(c * c, axis=1, keepdims=True)

        ssq = jax.lax.fori_loop(0, NB, body, jnp.zeros((C_out, 1), jnp.float32))
        var = ssq * inv_count                               # biased (PyTorch train-mode BN)
        scale = gamma_ref[...] * jax.lax.rsqrt(var + BN_EPS)
        scale_s[...] = scale
        shift_s[...] = beta_ref[...] - mean * scale

    @pl.when(p == 1)
    def _apply():
        z = y_acc[b] * scale_s[...] + shift_s[...]          # (C_out, Nb*L_out) f32
        # hswish: z * relu6(z + 3) / 6  (f32 epilogue; v5e has no bf16 VPU)
        h = z * jnp.clip(z + 3.0, 0.0, 6.0) * (1.0 / 6.0)
        for n in range(Nb):                                 # static unroll over the block
            o_ref[n] = h[:, n * L_out:(n + 1) * L_out].astype(o_ref.dtype)
        # TODO(synk): optionally emit bf16 output on v6e/v7x to halve store bytes.


def conv_block_forward(x, weight, gamma, beta, *, stride, padding):
    """x: (N, C_in, L) NCL.  weight: (C_out, C_in, K).  Returns (N, C_out, L_out) NCL."""
    N, C_in, L = x.shape
    C_out, C_in_w, K = weight.shape
    assert C_in_w == C_in, "TODO(synk): groups > 1 (grouped/depthwise conv) not implemented"
    assert stride >= 1 and padding >= 0

    L_out = (L + 2 * padding - K) // stride + 1
    assert L_out > 0
    L_feed = L + 2 * padding

    # Input is fed exactly once (no K-fold pre-gather, even for stride > 1).
    x_feed = jnp.pad(x, ((0, 0), (0, 0), (padding, padding))).astype(jnp.bfloat16)
    # Weight reshaped for the stacked operand: w2[c_out, k*C_in + c_in] = w[c_out, c_in, k].
    w2 = jnp.transpose(weight, (0, 2, 1)).reshape(C_out, K * C_in).astype(jnp.bfloat16)
    gamma2 = gamma.reshape(C_out, 1).astype(jnp.float32)
    beta2 = beta.reshape(C_out, 1).astype(jnp.float32)

    # --- batch blocking (fold Nb batch elements into the matmul lane dimension) ---
    Nb = _pick_batch_block(N, L_out)
    NB = N // Nb

    # --- generation-aware VMEM budget + explicit scoped limit -----------------------
    BF16, F32 = 2, 4
    x_blk = Nb * C_in * L_feed * BF16
    out_blk = Nb * C_out * L_out * F32
    w_blk = C_out * K * C_in * BF16
    slab_f32 = C_out * Nb * L_out * F32               # y / z / finalize temporaries
    stack_bf16 = K * C_in * Nb * L_out * BF16
    y_acc_bytes = N * C_out * L_out * F32              # resident conv intermediate
    approx_vmem = (y_acc_bytes
                   + 2 * (x_blk + out_blk + w_blk)     # double-buffered blocks
                   + stack_bf16 + 3 * slab_f32         # in-kernel temporaries
                   + 8 * C_out * F32)                  # stats scratch
    physical = _physical_vmem_bytes()
    budget = int(0.75 * physical)
    if approx_vmem > budget:
        # TODO(synk): fall back to a length-tiled two-pass variant with per-tile partial
        #             stats instead of keeping the whole conv output VMEM-resident.
        raise ValueError(
            f"fused ConvBlock needs ~{approx_vmem / 2**20:.1f} MiB VMEM "
            f"(> {budget / 2**20:.1f} MiB budget on this chip); tile L_out instead")
    vmem_limit = int(min(0.9 * physical, max(2 * approx_vmem, 32 * 1024 * 1024)))

    kernel = functools.partial(
        _convblock_kernel, K=K, L_out=L_out, Nb=Nb, NB=NB, stride=stride,
        inv_count=1.0 / float(N * L_out))

    cost = pl.CostEstimate(
        flops=2 * N * K * C_out * C_in * L_out + 8 * N * C_out * L_out,
        transcendentals=0,
        bytes_accessed=int(x_feed.size * BF16 + w2.size * BF16
                           + (gamma2.size + beta2.size) * F32
                           + N * C_out * L_out * F32))

    # Phase 1 never reads x: pin it on the last phase-0 block (no redundant DMA).
    x_index = lambda p, b: (b * (1 - p) + (NB - 1) * p, 0, 0)

    return pl.pallas_call(
        kernel,
        out_shape=jax.ShapeDtypeStruct((N, C_out, L_out), jnp.float32),
        grid=(2, NB),                                   # (phase, batch block)
        in_specs=[
            pl.BlockSpec((Nb, C_in, L_feed), x_index),
            pl.BlockSpec((C_out, K * C_in), lambda p, b: (0, 0)),
            pl.BlockSpec((C_out, 1), lambda p, b: (0, 0)),
            pl.BlockSpec((C_out, 1), lambda p, b: (0, 0)),
        ],
        # NCL output, length on lanes; phase 0 parks on block 0 (no writeback churn),
        # phase 1 writes each block exactly once.
        out_specs=pl.BlockSpec((Nb, C_out, L_out), lambda p, b: (b * p, 0, 0)),
        scratch_shapes=[
            pltpu.VMEM((NB, C_out, Nb * L_out), jnp.float32),  # conv intermediate (on-chip)
            pltpu.VMEM((C_out, 1), jnp.float32),               # per-channel sum
            pltpu.VMEM((C_out, 1), jnp.float32),               # folded scale
            pltpu.VMEM((C_out, 1), jnp.float32),               # folded shift
        ],
        compiler_params=pltpu.CompilerParams(
            # Stats scratch is accumulated across BOTH grid axes -> traversal must stay
            # serial.  Do NOT flip an axis to "parallel" (e.g. v7x megacore) without
            # restructuring the sums as per-core partials.
            dimension_semantics=("arbitrary", "arbitrary"),
            vmem_limit_bytes=vmem_limit),
        cost_estimate=cost,
    )(x_feed, w2, gamma2, beta2)


def _reference(x, weight, gamma, beta, *, stride, padding):
    """Pure-JAX reference matching PyTorch ConvBlock.forward (train-mode BN)."""
    y = jax.lax.conv_general_dilated(
        x, weight, window_strides=(stride,), padding=[(padding, padding)],
        dimension_numbers=("NCH", "OIH", "NCH"))
    mean = jnp.mean(y, axis=(0, 2), keepdims=True)
    var = jnp.mean((y - mean) ** 2, axis=(0, 2), keepdims=True)
    z = (y - mean) * jax.lax.rsqrt(var + BN_EPS)
    z = z * gamma[None, :, None] + beta[None, :, None]
    return z * jnp.clip(z + 3.0, 0.0, 6.0) / 6.0


if __name__ == "__main__":
    key = jax.random.PRNGKey(0)
    k1, k2, k3, k4 = jax.random.split(key, 4)

    # ConvBlock(in_channels=4, out_channels=8, kernel_size=3, stride=1, padding=1)
    N, C_in, L = 2, 4, 16
    C_out, K, stride, padding = 8, 3, 1, 1

    x = jax.random.normal(k1, (N, C_in, L), dtype=jnp.float32)
    weight = jax.random.normal(k2, (C_out, C_in, K), dtype=jnp.float32) * 0.3
    gamma = 1.0 + 0.1 * jax.random.normal(k3, (C_out,), dtype=jnp.float32)
    beta = 0.1 * jax.random.normal(k4, (C_out,), dtype=jnp.float32)

    out = conv_block_forward(x, weight, gamma, beta, stride=stride, padding=padding)
    out = jax.block_until_ready(out)

    # Precision-matched reference: the kernel feeds the MXU bf16 operands, so round the
    # reference inputs to bf16 too (all other math stays f32 in both paths).
    xq = x.astype(jnp.bfloat16).astype(jnp.float32)
    wq = weight.astype(jnp.bfloat16).astype(jnp.float32)
    ref = _reference(xq, wq, gamma, beta, stride=stride, padding=padding)

    assert out.shape == ref.shape == (N, C_out, (L + 2 * padding - K) // stride + 1)
    assert jnp.allclose(out, ref, rtol=1e-3, atol=1e-3), "mismatch vs reference"

    print("KERNEL_OK")
</pallas_src>

<mosaic_0001>
module attributes {stable_mosaic.version = 11 : i64} {
  func.func @_convblock_kernel(%arg0: i32, %arg1: i32, %arg2: memref<2x4x18xbf16, #tpu.memory_space<vmem>>, %arg3: memref<8x12xbf16, #tpu.memory_space<vmem>>, %arg4: memref<8x1xf32, #tpu.memory_space<vmem>>, %arg5: memref<8x1xf32, #tpu.memory_space<vmem>>, %arg6: memref<2x8x16xf32, #tpu.memory_space<vmem>>, %arg7: memref<1x8x32xf32, #tpu.memory_space<vmem>>, %arg8: memref<8x1xf32, #tpu.memory_space<vmem>>, %arg9: memref<8x1xf32, #tpu.memory_space<vmem>>, %arg10: memref<8x1xf32, #tpu.memory_space<vmem>>) attributes {dimension_semantics = [#tpu.dimension_semantics<arbitrary>, #tpu.dimension_semantics<arbitrary>], iteration_bounds = array<i64: 2, 1>, scalar_prefetch = 0 : i64, scratch_operands = 4 : i64, tpu.core_type = #tpu.core_type<tc>, window_params = [{transform_indices = @transform_0, window_bounds = array<i64: 2, 4, 18>}, {pipeline_mode = #tpu.pipeline_mode<synchronous>, transform_indices = @transform_1, window_bounds = array<i64: 8, 12>}, {pipeline_mode = #tpu.pipeline_mode<synchronous>, transform_indices = @transform_2, window_bounds = array<i64: 8, 1>}, {pipeline_mode = #tpu.pipeline_mode<synchronous>, transform_indices = @transform_3, window_bounds = array<i64: 8, 1>}, {transform_indices = @transform_4, window_bounds = array<i64: 2, 8, 16>}]} {
    %c0_i32 = arith.constant 0 : i32
    %0 = arith.cmpi eq, %arg0, %c0_i32 : i32
    %c0_i32_0 = arith.constant 0 : i32
    %1 = arith.cmpi eq, %arg1, %c0_i32_0 : i32
    %2 = arith.andi %0, %1 : i1
    %3 = arith.extui %2 : i1 to i32
    %c0_i32_1 = arith.constant 0 : i32
    %4 = arith.cmpi ne, %3, %c0_i32_1 : i32
    scf.if %4 {
      %cst = arith.constant 0.000000e+00 : f32
      %16 = vector.broadcast %cst : f32 to vector<8x1xf32>
      %c0 = arith.constant 0 : index
      %c0_8 = arith.constant 0 : index
      %17 = vector.load %arg8[%c0, %c0_8] : memref<8x1xf32, #tpu.memory_space<vmem>>, vector<8x1xf32>
      tpu.vector_store %arg8[%c0, %c0_8], %16 {strides = array<i32>} : memref<8x1xf32, #tpu.memory_space<vmem>>, vector<8x1xf32>,
    } else {
    }
    %c0_i32_2 = arith.constant 0 : i32
    %5 = arith.cmpi eq, %arg0, %c0_i32_2 : i32
    %6 = arith.extui %5 : i1 to i32
    %c0_i32_3 = arith.constant 0 : i32
    %7 = arith.cmpi ne, %6, %c0_i32_3 : i32
    scf.if %7 {
      %c0 = arith.constant 0 : index
      %c0_8 = arith.constant 0 : index
      %c0_9 = arith.constant 0 : index
      %16 = vector.load %arg2[%c0, %c0_8, %c0_9] : memref<2x4x18xbf16, #tpu.memory_space<vmem>>, vector<1x4x16xbf16>
      %17 = vector.shape_cast %16 : vector<1x4x16xbf16> to vector<4x16xbf16>
      %c0_10 = arith.constant 0 : index
      %c0_11 = arith.constant 0 : index
      %c1 = arith.constant 1 : index
      %18 = vector.load %arg2[%c0_10, %c0_11, %c1] : memref<2x4x18xbf16, #tpu.memory_space<vmem>>, vector<1x4x16xbf16>
      %19 = vector.shape_cast %18 : vector<1x4x16xbf16> to vector<4x16xbf16>
      %c0_12 = arith.constant 0 : index
      %c0_13 = arith.constant 0 : index
      %c2 = arith.constant 2 : index
      %20 = vector.load %arg2[%c0_12, %c0_13, %c2] : memref<2x4x18xbf16, #tpu.memory_space<vmem>>, vector<1x4x16xbf16>
      %21 = vector.shape_cast %20 : vector<1x4x16xbf16> to vector<4x16xbf16>
      %22 = tpu.concatenate %17, %19, %21 in 0 : vector<4x16xbf16>, vector<4x16xbf16>, vector<4x16xbf16> -> vector<12x16xbf16>
      %c1_14 = arith.constant 1 : index
      %c0_15 = arith.constant 0 : index
      %c0_16 = arith.constant 0 : index
      %23 = vector.load %arg2[%c1_14, %c0_15, %c0_16] : memref<2x4x18xbf16, #tpu.memory_space<vmem>>, vector<1x4x16xbf16>
      %24 = vector.shape_cast %23 : vector<1x4x16xbf16> to vector<4x16xbf16>
      %c1_17 = arith.constant 1 : index
      %c0_18 = arith.constant 0 : index
      %c1_19 = arith.constant 1 : index
      %25 = vector.load %arg2[%c1_17, %c0_18, %c1_19] : memref<2x4x18xbf16, #tpu.memory_space<vmem>>, vector<1x4x16xbf16>
      %26 = vector.shape_cast %25 : vector<1x4x16xbf16> to vector<4x16xbf16>
      %c1_20 = arith.constant 1 : index
      %c0_21 = arith.constant 0 : index
      %c2_22 = arith.constant 2 : index
      %27 = vector.load %arg2[%c1_20, %c0_21, %c2_22] : memref<2x4x18xbf16, #tpu.memory_space<vmem>>, vector<1x4x16xbf16>
      %28 = vector.shape_cast %27 : vector<1x4x16xbf16> to vector<4x16xbf16>
      %29 = tpu.concatenate %24, %26, %28 in 0 : vector<4x16xbf16>, vector<4x16xbf16>, vector<4x16xbf16> -> vector<12x16xbf16>
      %30 = tpu.concatenate %22, %29 in 1 : vector<12x16xbf16>, vector<12x16xbf16> -> vector<12x32xbf16>
      %c0_23 = arith.constant 0 : index
      %c0_24 = arith.constant 0 : index
      %31 = vector.load %arg3[%c0_23, %c0_24] : memref<8x12xbf16, #tpu.memory_space<vmem>>, vector<8x12xbf16>
      %cst = arith.constant dense<0.000000e+00> : vector<8x32xf32>
      %32 = tpu.matmul %31, %30, %cst {dimension_numbers = #tpu.dot_dimension_numbers<[1], [0], [0], [1], [0, 0, 1, 1], [], []>} : vector<8x12xbf16>, vector<12x32xbf16>, vector<8x32xf32> -> vector<8x32xf32>
      %33 = arith.index_cast %arg1 : i32 to index
      %c0_25 = arith.constant 0 : index
      %c0_26 = arith.constant 0 : index
      %34 = vector.load %arg7[%33, %c0_25, %c0_26] : memref<1x8x32xf32, #tpu.memory_space<vmem>>, vector<1x8x32xf32>
      %35 = vector.shape_cast %34 : vector<1x8x32xf32> to vector<8x32xf32>
      %36 = vector.shape_cast %32 : vector<8x32xf32> to vector<1x8x32xf32>
      tpu.vector_store %arg7[%33, %c0_25, %c0_26], %36 {strides = array<i32>} : memref<1x8x32xf32, #tpu.memory_space<vmem>>, vector<1x8x32xf32>,
      %c0_27 = arith.constant 0 : index
      %c0_28 = arith.constant 0 : index
      %37 = vector.load %arg8[%c0_27, %c0_28] : memref<8x1xf32, #tpu.memory_space<vmem>>, vector<8x1xf32>
      %cst_29 = arith.constant dense<0.000000e+00> : vector<8xf32>
      %38 = vector.multi_reduction <add>, %32, %cst_29 [1] : vector<8x32xf32> to vector<8xf32>
      %39 = vector.shape_cast %38 : vector<8xf32> to vector<8x1xf32>
      %40 = arith.addf %37, %39 : vector<8x1xf32>
      %c0_30 = arith.constant 0 : index
      %c0_31 = arith.constant 0 : index
      %41 = vector.load %arg8[%c0_30, %c0_31] : memref<8x1xf32, #tpu.memory_space<vmem>>, vector<8x1xf32>
      tpu.vector_store %arg8[%c0_30, %c0_31], %40 {strides = array<i32>} : memref<8x1xf32, #tpu.memory_space<vmem>>, vector<8x1xf32>,
    } else {
    }
    %c1_i32 = arith.constant 1 : i32
    %8 = arith.cmpi eq, %arg0, %c1_i32 : i32
    %c0_i32_4 = arith.constant 0 : i32
    %9 = arith.cmpi eq, %arg1, %c0_i32_4 : i32
    %10 = arith.andi %8, %9 : i1
    %11 = arith.extui %10 : i1 to i32
    %c0_i32_5 = arith.constant 0 : i32
    %12 = arith.cmpi ne, %11, %c0_i32_5 : i32
    scf.if %12 {
      %c0 = arith.constant 0 : index
      %c0_8 = arith.constant 0 : index
      %16 = vector.load %arg8[%c0, %c0_8] : memref<8x1xf32, #tpu.memory_space<vmem>>, vector<8x1xf32>
      %cst = arith.constant 3.125000e-02 : f32
      %17 = vector.broadcast %cst : f32 to vector<8x1xf32>
      %18 = arith.mulf %16, %17 : vector<8x1xf32>
      %cst_9 = arith.constant 0.000000e+00 : f32
      %19 = vector.broadcast %cst_9 : f32 to vector<8x1xf32>
      %c0_i32_10 = arith.constant 0 : i32
      %20 = arith.index_cast %c0_i32_10 : i32 to index
      %c0_11 = arith.constant 0 : index
      %c0_12 = arith.constant 0 : index
      %21 = vector.load %arg7[%20, %c0_11, %c0_12] : memref<1x8x32xf32, #tpu.memory_space<vmem>>, vector<1x8x32xf32>
      %22 = vector.shape_cast %21 : vector<1x8x32xf32> to vector<8x32xf32>
      %23 = vector.broadcast %18 : vector<8x1xf32> to vector<8x32xf32>
      %24 = arith.subf %22, %23 : vector<8x32xf32>
      %25 = arith.mulf %24, %24 : vector<8x32xf32>
      %cst_13 = arith.constant dense<0.000000e+00> : vector<8xf32>
      %26 = vector.multi_reduction <add>, %25, %cst_13 [1] : vector<8x32xf32> to vector<8xf32>
      %27 = vector.shape_cast %26 : vector<8xf32> to vector<8x1xf32>
      %28 = arith.addf %19, %27 : vector<8x1xf32>
      %c1_i32_14 = arith.constant 1 : i32
      %cst_15 = arith.constant 3.125000e-02 : f32
      %29 = vector.broadcast %cst_15 : f32 to vector<8x1xf32>
      %30 = arith.mulf %28, %29 : vector<8x1xf32>
      %c0_16 = arith.constant 0 : index
      %c0_17 = arith.constant 0 : index
      %31 = vector.load %arg4[%c0_16, %c0_17] : memref<8x1xf32, #tpu.memory_space<vmem>>, vector<8x1xf32>
      %cst_18 = arith.constant 9.99999974E-6 : f32
      %32 = vector.broadcast %cst_18 : f32 to vector<8x1xf32>
      %33 = arith.addf %30, %32 : vector<8x1xf32>
      %34 = math.rsqrt %33 : vector<8x1xf32>
      %35 = arith.mulf %31, %34 : vector<8x1xf32>
      %c0_19 = arith.constant 0 : index
      %c0_20 = arith.constant 0 : index
      %36 = vector.load %arg9[%c0_19, %c0_20] : memref<8x1xf32, #tpu.memory_space<vmem>>, vector<8x1xf32>
      tpu.vector_store %arg9[%c0_19, %c0_20], %35 {strides = array<i32>} : memref<8x1xf32, #tpu.memory_space<vmem>>, vector<8x1xf32>,
      %c0_21 = arith.constant 0 : index
      %c0_22 = arith.constant 0 : index
      %37 = vector.load %arg5[%c0_21, %c0_22] : memref<8x1xf32, #tpu.memory_space<vmem>>, vector<8x1xf32>
      %38 = arith.mulf %18, %35 : vector<8x1xf32>
      %39 = arith.subf %37, %38 : vector<8x1xf32>
      %c0_23 = arith.constant 0 : index
      %c0_24 = arith.constant 0 : index
      %40 = vector.load %arg10[%c0_23, %c0_24] : memref<8x1xf32, #tpu.memory_space<vmem>>, vector<8x1xf32>
      tpu.vector_store %arg10[%c0_23, %c0_24], %39 {strides = array<i32>} : memref<8x1xf32, #tpu.memory_space<vmem>>, vector<8x1xf32>,
    } else {
    }
    %c1_i32_6 = arith.constant 1 : i32
    %13 = arith.cmpi eq, %arg0, %c1_i32_6 : i32
    %14 = arith.extui %13 : i1 to i32
    %c0_i32_7 = arith.constant 0 : i32
    %15 = arith.cmpi ne, %14, %c0_i32_7 : i32
    scf.if %15 {
      %16 = arith.index_cast %arg1 : i32 to index
      %c0 = arith.constant 0 : index
      %c0_8 = arith.constant 0 : index
      %17 = vector.load %arg7[%16, %c0, %c0_8] : memref<1x8x32xf32, #tpu.memory_space<vmem>>, vector<1x8x32xf32>
      %18 = vector.shape_cast %17 : vector<1x8x32xf32> to vector<8x32xf32>
      %c0_9 = arith.constant 0 : index
      %c0_10 = arith.constant 0 : index
      %19 = vector.load %arg9[%c0_9, %c0_10] : memref<8x1xf32, #tpu.memory_space<vmem>>, vector<8x1xf32>
      %20 = vector.broadcast %19 : vector<8x1xf32> to vector<8x32xf32>
      %21 = arith.mulf %18, %20 : vector<8x32xf32>
      %c0_11 = arith.constant 0 : index
      %c0_12 = arith.constant 0 : index
      %22 = vector.load %arg10[%c0_11, %c0_12] : memref<8x1xf32, #tpu.memory_space<vmem>>, vector<8x1xf32>
      %23 = vector.broadcast %22 : vector<8x1xf32> to vector<8x32xf32>
      %24 = arith.addf %21, %23 : vector<8x32xf32>
      %cst = arith.constant 3.000000e+00 : f32
      %25 = vector.broadcast %cst : f32 to vector<8x32xf32>
      %26 = arith.addf %24, %25 : vector<8x32xf32>
      %cst_13 = arith.constant 0.000000e+00 : f32
      %cst_14 = arith.constant 6.000000e+00 : f32
      %27 = vector.broadcast %cst_13 : f32 to vector<8x32xf32>
      %28 = arith.maximumf %27, %26 : vector<8x32xf32>
      %29 = vector.broadcast %cst_14 : f32 to vector<8x32xf32>
      %30 = arith.minimumf %29, %28 : vector<8x32xf32>
      %31 = arith.mulf %24, %30 : vector<8x32xf32>
      %cst_15 = arith.constant 0.166666672 : f32
      %32 = vector.broadcast %cst_15 : f32 to vector<8x32xf32>
      %33 = arith.mulf %31, %32 : vector<8x32xf32>
      %34 = vector.extract_strided_slice %33 {offsets = [0, 0], sizes = [8, 16], strides = [1, 1]} : vector<8x32xf32> to vector<8x16xf32>
      %c0_16 = arith.constant 0 : index
      %c0_17 = arith.constant 0 : index
      %c0_18 = arith.constant 0 : index
      %35 = vector.load %arg6[%c0_16, %c0_17, %c0_18] : memref<2x8x16xf32, #tpu.memory_space<vmem>>, vector<1x8x16xf32>
      %36 = vector.shape_cast %35 : vector<1x8x16xf32> to vector<8x16xf32>
      %37 = vector.shape_cast %34 : vector<8x16xf32> to vector<1x8x16xf32>
      tpu.vector_store %arg6[%c0_16, %c0_17, %c0_18], %37 {strides = array<i32>} : memref<2x8x16xf32, #tpu.memory_space<vmem>>, vector<1x8x16xf32>,
      %38 = vector.extract_strided_slice %33 {offsets = [0, 16], sizes = [8, 16], strides = [1, 1]} : vector<8x32xf32> to vector<8x16xf32>
      %c1 = arith.constant 1 : index
      %c0_19 = arith.constant 0 : index
      %c0_20 = arith.constant 0 : index
      %39 = vector.load %arg6[%c1, %c0_19, %c0_20] : memref<2x8x16xf32, #tpu.memory_space<vmem>>, vector<1x8x16xf32>
      %40 = vector.shape_cast %39 : vector<1x8x16xf32> to vector<8x16xf32>
      %41 = vector.shape_cast %38 : vector<8x16xf32> to vector<1x8x16xf32>
      tpu.vector_store %arg6[%c1, %c0_19, %c0_20], %41 {strides = array<i32>} : memref<2x8x16xf32, #tpu.memory_space<vmem>>, vector<1x8x16xf32>,
    } else {
    }
    return
  }
  func.func @transform_0(%arg0: i32, %arg1: i32) -> (i32, i32, i32) {
    %c1_i32 = arith.constant 1 : i32
    %0 = arith.subi %c1_i32, %arg0 : i32
    %1 = arith.muli %arg1, %0 : i32
    %c0_i32 = arith.constant 0 : i32
    %2 = arith.muli %c0_i32, %arg0 : i32
    %3 = arith.addi %1, %2 : i32
    %c0_i32_0 = arith.constant 0 : i32
    %c0_i32_1 = arith.constant 0 : i32
    %c0_i32_2 = arith.constant 0 : i32
    return %3, %c0_i32_0, %c0_i32_1 : i32, i32, i32
  }
  func.func @transform_1(%arg0: i32, %arg1: i32) -> (i32, i32) {
    %c0_i32 = arith.constant 0 : i32
    %c0_i32_0 = arith.constant 0 : i32
    %c0_i32_1 = arith.constant 0 : i32
    return %c0_i32, %c0_i32_0 : i32, i32
  }
  func.func @transform_2(%arg0: i32, %arg1: i32) -> (i32, i32) {
    %c0_i32 = arith.constant 0 : i32
    %c0_i32_0 = arith.constant 0 : i32
    %c0_i32_1 = arith.constant 0 : i32
    return %c0_i32, %c0_i32_0 : i32, i32
  }
  func.func @transform_3(%arg0: i32, %arg1: i32) -> (i32, i32) {
    %c0_i32 = arith.constant 0 : i32
    %c0_i32_0 = arith.constant 0 : i32
    %c0_i32_1 = arith.constant 0 : i32
    return %c0_i32, %c0_i32_0 : i32, i32
  }
  func.func @transform_4(%arg0: i32, %arg1: i32) -> (i32, i32, i32) {
    %0 = arith.muli %arg1, %arg0 : i32
    %c0_i32 = arith.constant 0 : i32
    %c0_i32_0 = arith.constant 0 : i32
    %c0_i32_1 = arith.constant 0 : i32
    return %0, %c0_i32, %c0_i32_0 : i32, i32, i32
  }
}

</mosaic_0001>

<llo_original>
// kernel: tpu_custom_call.1
$region0: #{tpu_custom_call.1}
  #allocation0 [shape = 'u32[]', space=smem, size = 0x4, offset = 0x4, fixed_abs, tag = 'smem constant byte address 0x4 - core index']
  #allocation1 [shape = 'u32[144,128]{1,0:T(1,128)}', space=vmem, size = 0x12000, scoped, tag = 'internal scratch']
  #allocation2 [shape = 'f32[1,8,32]{2,1,0:T(8,128)}', space=vmem, size = 0x1000, scoped, tag = 'scratch operand']
  #allocation3 [shape = 'f32[8,1]{1,0:T(8,128)}', space=vmem, size = 0x1000, scoped, tag = 'scratch operand']
  #allocation4 [shape = 'f32[8,1]{1,0:T(8,128)}', space=vmem, size = 0x1000, scoped, tag = 'scratch operand']
  #allocation5 [shape = 'f32[8,1]{1,0:T(8,128)}', space=vmem, size = 0x1000, scoped, tag = 'scratch operand']
  %s0 = inlined_call_operand.vmem [shape: bf16[2,4,18], index: 0, kind: input, shape index: {}]
  %s1 = inlined_call_operand.vmem [shape: bf16[8,12], index: 1, kind: input, shape index: {}]
  %s2 = inlined_call_operand.vmem [shape: f32[8,1], index: 2, kind: input, shape index: {}]
  %s3 = inlined_call_operand.vmem [shape: f32[8,1], index: 3, kind: input, shape index: {}]
  %s4 = inlined_call_operand.hbm [shape: f32[2,8,16], index: 4, kind: output, shape index: {}]
  %s5 = sld [smem:[#allocation0]]
  $region65: #{tpu_custom_call.1} parent=0
    _
  %s7 = ssub.s32 1, %s5
  %s8 = scalar_select 0, %s7, %s5
  $region1: #{tpu_custom_call.1} parent=0
    #allocation6 [shape = 'u8[16384]{0}', space=vmem, size = 0x4000, scoped, tag = 'output window, operand 0']
    #allocation7 [shape = 's32[2]{0}', space=sflag, size = 0x8, scoped, tag = 'scoped memory for tpu_custom_call.1']
    %9 = vsyncpa [#allocation7], 0
    %s10 = scalar_lea.sflag [#allocation7], 1
    %11 = vsyncpa %s10, 0
    loop: start=0, step=1, limit=4
    $region2: #{tpu_custom_call.1} parent=1 // loop_pre_header
      _
    $region3: #{tpu_custom_call.1} parent=1 // loop_header
      %s13 = sphi 0, %s17
      %p14 = scmp.ge.s32.totalorder %s13, 4
      %s20 = sphi 0, %s32
      %s21 = sphi 0, %s28
      %s22 = sphi 0, %s20
      %s23 = sphi 0, %s21
      %s24 = sphi 0, %s22
      %s25 = sphi 0, %s23
      %s39 = sphi 0, %s41
      %s42 = sphi 0, %s39
      %s43 = sphi 0, %s42
      %s59 = sphi 0, %s43
      %s63 = sphi 0, %s63
      %s65 = sphi 0, %s63
      %s66 = sphi 0, %s65
      %s80 = sphi 0, %s66
      %s84 = sphi 0, %s84
      %s86 = sphi 0, %s84
      %s87 = sphi 0, %s86
      %s101 = sphi 0, %s87
      %s105 = sphi 0, %s105
      %s107 = sphi 0, %s105
      %s108 = sphi 0, %s107
      %s122 = sphi 0, %s108
      %s130 = sphi 0, %s132
      %s133 = sphi 0, %s130
      %s134 = sphi 0, %s133
      %s150 = sphi 0, %s134
    $region4: #{tpu_custom_call.1} parent=1 // loop_header_branch
      %16 = sbr.rel (%p14) target = $region8
    $region5: #{tpu_custom_call.1} parent=1 // loop_body
      %s18 = ssub.s32 %s13, 1
      %s19 = ssub.s32 %s13, 2
      %s26 = sadd.s32 1, %s21
      %p27 = scmp.ge.s32.totalorder %s26, 1
      %s28 = scalar_select %p27, 0, %s26
      %s29 = sadd.s32 1, %s20
      %s30 = scalar_select %p27, %s29, %s20
      %p31 = scmp.ge.s32.totalorder %s30, 2
      %s32 = scalar_select %p31, 0, %s30
      %s33 = ssub.s32 1, %s20
      %s34 = smul.u32 %s21, %s33
      %s35 = ssub.s32 1, %s32
      %s36 = smul.u32 %s28, %s35
      %s37 = ssub.s32 %s34, %s36
      %p38 = scmp.eq.s32.totalorder %s37, 0
      %s40 = sadd.s32 %s39, 1
      %s41 = scalar_select %p38, %s39, %s40
      %p44 = pneg %p38
      %p45 = scmp.eq.s32.totalorder %s13, 1
      %p46 = por %p44, %p45
      %p47 = scmp.ne.s32.totalorder %s39, %s42
      %p48 = scmp.eq.s32.totalorder %s13, 0
      %p49 = por %p47, %p48
      %p50 = scmp.ne.s32.totalorder %s39, %s42
      %p51 = scmp.eq.s32.totalorder %s18, 1
      %p52 = por %p50, %p51
      %p53 = scmp.ne.s32.totalorder %s42, %s43
      %p54 = scmp.eq.s32.totalorder %s18, 0
      %p55 = por %p53, %p54
      %p56 = scmp.ne.s32.totalorder %s42, %s43
      %p57 = scmp.eq.s32.totalorder %s19, 1
      %p58 = por %p56, %p57
      %p60 = scmp.ne.s32.totalorder %s43, %s59
      %p61 = scmp.eq.s32.totalorder %s19, 0
      %p62 = por %p60, %p61
      %s64 = sadd.s32 %s63, 1
      %p67 = scmp.eq.s32.totalorder %s13, 1
      %p68 = scmp.ne.s32.totalorder %s63, %s65
      %p69 = scmp.eq.s32.totalorder %s13, 0
      %p70 = por %p68, %p69
      %p71 = scmp.ne.s32.totalorder %s63, %s65
      %p72 = scmp.eq.s32.totalorder %s18, 1
      %p73 = por %p71, %p72
      %p74 = scmp.ne.s32.totalorder %s65, %s66
      %p75 = scmp.eq.s32.totalorder %s18, 0
      %p76 = por %p74, %p75
      %p77 = scmp.ne.s32.totalorder %s65, %s66
      %p78 = scmp.eq.s32.totalorder %s19, 1
      %p79 = por %p77, %p78
      %p81 = scmp.ne.s32.totalorder %s66, %s80
      %p82 = scmp.eq.s32.totalorder %s19, 0
      %p83 = por %p81, %p82
      %s85 = sadd.s32 %s84, 1
      %p88 = scmp.eq.s32.totalorder %s13, 1
      %p89 = scmp.ne.s32.totalorder %s84, %s86
      %p90 = scmp.eq.s32.totalorder %s13, 0
      %p91 = por %p89, %p90
      %p92 = scmp.ne.s32.totalorder %s84, %s86
      %p93 = scmp.eq.s32.totalorder %s18, 1
      %p94 = por %p92, %p93
      %p95 = scmp.ne.s32.totalorder %s86, %s87
      %p96 = scmp.eq.s32.totalorder %s18, 0
      %p97 = por %p95, %p96
      %p98 = scmp.ne.s32.totalorder %s86, %s87
      %p99 = scmp.eq.s32.totalorder %s19, 1
      %p100 = por %p98, %p99
      %p102 = scmp.ne.s32.totalorder %s87, %s101
      %p103 = scmp.eq.s32.totalorder %s19, 0
      %p104 = por %p102, %p103
      %s106 = sadd.s32 %s105, 1
      %p109 = scmp.eq.s32.totalorder %s13, 1
      %p110 = scmp.ne.s32.totalorder %s105, %s107
      %p111 = scmp.eq.s32.totalorder %s13, 0
      %p112 = por %p110, %p111
      %p113 = scmp.ne.s32.totalorder %s105, %s107
      %p114 = scmp.eq.s32.totalorder %s18, 1
      %p115 = por %p113, %p114
      %p116 = scmp.ne.s32.totalorder %s107, %s108
      %p117 = scmp.eq.s32.totalorder %s18, 0
      %p118 = por %p116, %p117
      %p119 = scmp.ne.s32.totalorder %s107, %s108
      %p120 = scmp.eq.s32.totalorder %s19, 1
      %p121 = por %p119, %p120
      %p123 = scmp.ne.s32.totalorder %s108, %s122
      %p124 = scmp.eq.s32.totalorder %s19, 0
      %p125 = por %p123, %p124
      %s126 = smul.u32 %s21, %s20
      %s127 = smul.u32 %s28, %s32
      %s128 = ssub.s32 %s126, %s127
      %p129 = scmp.eq.s32.totalorder %s128, 0
      %s131 = sadd.s32 %s130, 1
      %s132 = scalar_select %p129, %s130, %s131
      %p135 = pneg %p129
      %p136 = scmp.eq.s32.totalorder %s13, 1
      %p137 = por %p135, %p136
      %p138 = scmp.ne.s32.totalorder %s130, %s133
      %p139 = scmp.eq.s32.totalorder %s13, 0
      %p140 = por %p138, %p139
      %p141 = scmp.ne.s32.totalorder %s130, %s133
      %p142 = scmp.eq.s32.totalorder %s18, 1
      %p143 = por %p141, %p142
      %p144 = scmp.ne.s32.totalorder %s133, %s134
      %p145 = scmp.eq.s32.totalorder %s18, 0
      %p146 = por %p144, %p145
      %p147 = scmp.ne.s32.totalorder %s133, %s134
      %p148 = scmp.eq.s32.totalorder %s19, 1
      %p149 = por %p147, %p148
      %p151 = scmp.ne.s32.totalorder %s134, %s150
      %p152 = scmp.eq.s32.totalorder %s19, 0
      %p153 = por %p151, %p152
      %p154 = scmp.le.s32.totalorder 1, %s13
      %p155 = scmp.lt.s32.totalorder %s13, 3
      %p156 = pnand %p154, %p155
      %p157 = pneg %p156
      // Predicated region
      $region9: #{tpu_custom_call.1} parent=5 // pred_check
        _
      $region10: #{tpu_custom_call.1} parent=5 // pred_check_branch
        %159 = sbr.rel (%p156) target = $region12
      $region11: #{tpu_custom_call.1} parent=5 // pred_region
        %s160 = ssub.s32 %s13, 1
        // Predicated region
        $region13: #{tpu_custom_call.1} parent=11 // pred_check
          %p161 = pneg %p76
        $region14: #{tpu_custom_call.1} parent=11 // pred_check_branch
          %163 = sbr.rel (%p161) target = $region16
        $region15: #{tpu_custom_call.1} parent=11 // pred_region
          _
        $region16: #{tpu_custom_call.1} parent=11 // pred_fallthru
          _
        // Predicated region
        $region17: #{tpu_custom_call.1} parent=11 // pred_check
          %p164 = pneg %p97
        $region18: #{tpu_custom_call.1} parent=11 // pred_check_branch
          %166 = sbr.rel (%p164) target = $region20
        $region19: #{tpu_custom_call.1} parent=11 // pred_region
          _
        $region20: #{tpu_custom_call.1} parent=11 // pred_fallthru
          _
        // Predicated region
        $region21: #{tpu_custom_call.1} parent=11 // pred_check
          %p167 = pneg %p118
        $region22: #{tpu_custom_call.1} parent=11 // pred_check_branch
          %169 = sbr.rel (%p167) target = $region24
        $region23: #{tpu_custom_call.1} parent=11 // pred_region
          _
        $region24: #{tpu_custom_call.1} parent=11 // pred_fallthru
          _
      $region12: #{tpu_custom_call.1} parent=5 // pred_fallthru
        _
      %p170 = scmp.lt.s32.totalorder %s13, 2
      // Predicated region
      $region25: #{tpu_custom_call.1} parent=5 // pred_check
        %p171 = pneg %p170
      $region26: #{tpu_custom_call.1} parent=5 // pred_check_branch
        %173 = sbr.rel (%p171) target = $region28
      $region27: #{tpu_custom_call.1} parent=5 // pred_region
        // Predicated region
        $region29: #{tpu_custom_call.1} parent=27 // pred_check
          %p174 = pneg %p49
        $region30: #{tpu_custom_call.1} parent=27 // pred_check_branch
          %176 = sbr.rel (%p174) target = $region32
        $region31: #{tpu_custom_call.1} parent=27 // pred_region
          %s177 = ssub.s32 1, %s20
          %s178 = smul.u32 %s21, %s177
          %s179 = smul.u32 2, %s178
          %p180 = scmp.lt.s32.totalorder %s179, 1
          %s181 = scalar_select %p180, %s179, 1
          %s182 = smul.addr %s181, 2
          %s183 = scalar_lea.vmem %s0, %s182
          %s184 = ssub.s32 1, %s20
          %s185 = smul.u32 %s21, %s184
          %s186 = smul.u32 2, %s185
        $region32: #{tpu_custom_call.1} parent=27 // pred_fallthru
          _
      $region28: #{tpu_custom_call.1} parent=5 // pred_fallthru
        _
      %p187 = scmp.le.s32.totalorder 1, %s13
      %p188 = scmp.lt.s32.totalorder %s13, 3
      %p189 = pnand %p187, %p188
      %p190 = pneg %p189
      // Predicated region
      $region33: #{tpu_custom_call.1} parent=5 // pred_check
        _
      $region34: #{tpu_custom_call.1} parent=5 // pred_check_branch
        %192 = sbr.rel (%p189) target = $region36
      $region35: #{tpu_custom_call.1} parent=5 // pred_region
        %s193 = ssub.s32 %s13, 1
        %s194 = ssub.s32 1, %s22
        %s195 = smul.u32 %s23, %s194
        %s196 = smul.u32 2, %s195
        %p197 = scmp.lt.s32.totalorder %s196, 1
        %s198 = scalar_select %p197, %s196, 1
        %s199 = smul.addr %s198, 2
        %s200 = scalar_lea.vmem %s0, %s199
        %p201 = pneg %p55
        %p202 = pneg %p52
        %p203 = pneg %p76
        %p204 = pneg %p73
        %p205 = pneg %p97
        %p206 = pneg %p94
        %p207 = pneg %p118
        %p208 = pneg %p115
        %p209 = pneg %p146
        %p210 = pneg %p143
        %s211 = sand.u32 %s133, 1
        %s212 = scalar_lea.sflag [#allocation7], %s211
        %s213 = sand.u32 %s133, 1
        %s214 = smul.addr %s213, 16
        %s215 = scalar_lea.vmem [#allocation6], %s214
        %s216 = ssub.s32 1, %s22
        %s217 = smul.u32 %s23, %s216
        %s218 = smul.u32 2, %s217
        %p219 = scmp.lt.s32.totalorder %s218, 1
        %s220 = scalar_select %p219, %s218, 1
        %s221 = smul.addr %s220, 2
        %s222 = scalar_lea.vmem %s0, %s221
        %s223 = ssub.s32 1, %s22
        %s224 = smul.u32 %s23, %s223
        %s225 = smul.u32 2, %s224
        %s226 = smul.u32 %s23, %s22
        %s227 = smul.u32 2, %s226
        %p229 = scmp.eq.s32.totalorder %s22, 0
        %p230 = scmp.eq.s32.totalorder %s23, 0
        %p231 = pnand %p229, %p230
        %p232 = pneg %p231
        // Predicated region
        $region37: #{tpu_custom_call.1} parent=35 // pred_check
          _
        $region38: #{tpu_custom_call.1} parent=35 // pred_check_branch
          %234 = sbr.rel (%p231) target = $region40
        $region39: #{tpu_custom_call.1} parent=35 // pred_region
          %vm235 = vcmask 7168
          %236 = vst.msk [vmem:[#allocation3] sm:$0xff] %vm235, 0.0
        $region40: #{tpu_custom_call.1} parent=35 // pred_fallthru
          _
        // Predicated region
        $region41: #{tpu_custom_call.1} parent=35 // pred_check
          %p237 = pneg %p229
        $region42: #{tpu_custom_call.1} parent=35 // pred_check_branch
          %239 = sbr.rel (%p237) target = $region44
        $region43: #{tpu_custom_call.1} parent=35 // pred_region
          %v240 = vld [vmem:[%s222] sm:$0x3]
          %v242 = vcombine.low %v240, %v240
          %v244 = vunpack.c.l.s4 1983009808
          %v245 = vunpack.c.0.s8 %v244
          %v246 = vlaneseq
          %v247 = vshrl.u32 %v246, 7
          %v248 = vsub.s32 %v245, %v247
          %v249 = vrot.slane %v242, %v248
          %v251 = vunpack.c.l.s4 1983009808
          %v252 = vunpack.c.0.s8 %v251
          %v253 = vlaneseq
          %v254 = vshrl.u32 %v253, 7
          %v255 = vsub.s32 %v252, %v254
          %v256 = vrot.slane %v240, %v255
          %257 = vrot.lane.b32.xlu0 %v249, 127
          %v258 = vpop.permute.xlu0 %257
          %v259 = vcombine.low %v256, %v256
          %260 = vrot.lane.b32.xlu0 %v259, 126
          %v261 = vpop.permute.xlu0 %260
          %vm262 = vcmask 1041408
          %v265 = vsel %vm262, %v240, %v258
          %vm266 = vcmask 1043456
          %v268 = vsel %vm266, %v265, %v261
          %s269 = scalar_lea.vmem %s222, 2
          %v270 = vld [vmem:[%s269] sm:$0x3]
          %v272 = vcombine.low %v270, %v270
          %v274 = vunpack.c.l.s4 1983009808
          %v275 = vunpack.c.0.s8 %v274
          %v276 = vlaneseq
          %v277 = vshrl.u32 %v276, 7
          %v278 = vsub.s32 %v275, %v277
          %v279 = vrot.slane %v272, %v278
          %v281 = vunpack.c.l.s4 1983009808
          %v282 = vunpack.c.0.s8 %v281
          %v283 = vlaneseq
          %v284 = vshrl.u32 %v283, 7
          %v285 = vsub.s32 %v282, %v284
          %v286 = vrot.slane %v270, %v285
          %287 = vrot.lane.b32.xlu0 %v279, 127
          %v288 = vpop.permute.xlu0 %287
          %v289 = vcombine.low %v286, %v286
          %290 = vrot.lane.b32.xlu0 %v289, 126
          %v291 = vpop.permute.xlu0 %290
          %v294 = vsel %vm262, %v270, %v288
          %v296 = vsel %vm266, %v294, %v291
          %298 = vrot.lane.b32.xlu0 %v296, 16
          %v299 = vpop.permute.xlu0 %298
          %vm300 = vcmask 130048
          %v302 = vsel %vm300, %v268, %v299
          %v303 = vld [vmem:[%s1] sm:$0xf]
          %vm304 = vcmask 97280
          %v306 = vsel %vm304, %v303, 0
          %vm308 = vcmask 1045504
          %v309 = vsel %vm308, %v302, 0
          %311 = vmatprep.subr.bf16.mxu0 0
          %312 = vmatpush1.bf16.msra.mxu0 %v309
          %313 = vmatprep.subr.bf16.mxu0 0
          %314 = vmatpush1.bf16.msra.mxu0 0
          %315 = vmatprep.subr.bf16.mxu0 0
          %316 = vmatpush1.bf16.msra.mxu0 0
          %317 = vmatprep.subr.bf16.mxu0 0
          %318 = vmatpush1.bf16.msra.mxu0 0
          %319 = vmatprep.subr.bf16.mxu0 0
          %320 = vmatpush1.bf16.msra.mxu0 0
          %321 = vmatprep.subr.bf16.mxu0 0
          %322 = vmatpush1.bf16.msra.mxu0 0
          %323 = vmatprep.subr.bf16.mxu0 0
          %324 = vmatpush1.bf16.msra.mxu0 0
          %325 = vmatprep.subr.bf16.mxu0 0
          %326 = vmatpush1.bf16.msra.mxu0 0
          %327 = vmatprep.subr.bf16.mxu0 0
          %328 = vmatpush1.bf16.msra.mxu0 0
          %329 = vmatprep.subr.bf16.mxu0 0
          %330 = vmatpush1.bf16.msra.mxu0 0
          %331 = vmatprep.subr.bf16.mxu0 0
          %332 = vmatpush1.bf16.msra.mxu0 0
          %333 = vmatprep.subr.bf16.mxu0 0
          %334 = vmatpush1.bf16.msra.mxu0 0
          %335 = vmatprep.subr.bf16.mxu0 0
          %336 = vmatpush1.bf16.msra.mxu0 0
          %337 = vmatprep.subr.bf16.mxu0 0
          %338 = vmatpush1.bf16.msra.mxu0 0
          %339 = vmatprep.subr.bf16.mxu0 0
          %340 = vmatpush1.bf16.msra.mxu0 0
          %341 = vmatprep.subr.bf16.mxu0 0
          %342 = vmatpush1.bf16.msra.mxu0 0
          %343 = vmatprep.mubr.bf16.mxu0 0
          %344 = vmatmul.mubr.bf16.gmra.mrb[0].mxu0 %v306
          %v345 = vpop.f32.mrb[0].mxu0
          %v346 = vadd.f32 0.0, %v345
          %v347 = vpop.f32.mrb[0].mxu0
          %v348 = vpop.f32.mrb[0].mxu0
          %v349 = vpop.f32.mrb[0].mxu0
          %350 = vdwg.mxu0
          %s351 = smul.u32 %s23, 8
          %s352 = scalar_lea.vmem [#allocation2], %s351
          %vm353 = vcmask 261120
          %354 = vst.msk [vmem:[%s352] sm:$0xff] %vm353, %v346
          %v355 = vld [vmem:[#allocation3] sm:$0xff]
          %v356 = vsel %vm353, %v346, 0.0
          %357 = vadd.xlane.f32.xlu0 %v356
          %v358 = vpop.xlane.xlu0 %357
          %v359 = vadd.f32 %v355, %v358
          %vm360 = vcmask 7168
          %361 = vst.msk [vmem:[#allocation3] sm:$0xff] %vm360, %v359
        $region44: #{tpu_custom_call.1} parent=35 // pred_fallthru
          _
        %p362 = scmp.eq.s32.totalorder %s22, 1
        %p363 = pnand %p362, %p230
        %p364 = pneg %p363
        // Predicated region
        $region45: #{tpu_custom_call.1} parent=35 // pred_check
          _
        $region46: #{tpu_custom_call.1} parent=35 // pred_check_branch
          %366 = sbr.rel (%p363) target = $region48
        $region47: #{tpu_custom_call.1} parent=35 // pred_region
          %v367 = vld [vmem:[#allocation3] sm:$0xff]
          %v368 = vmul.f32 %v367, 0.03125
          %v369 = vld [vmem:[#allocation2] sm:$0xff]
          %371 = vset.pattern.permute.xlu0 0
          %372 = vperm.xlu0 %371, %v368
          %v373 = vpop.permute.xlu0 %372
          %v375 = vsub.f32 %v369, %v373
          %v376 = vmul.f32 %v375, %v375
          %vm377 = vcmask 261120
          %v378 = vsel %vm377, %v376, 0.0
          %379 = vadd.xlane.f32.xlu0 %v378
          %v380 = vpop.xlane.xlu0 %379
          %v381 = vadd.f32 %v380, 0.0
          %v382 = vmul.f32 %v381, 0.03125
          %v383 = vld [vmem:[%s2] sm:$0xff]
          %v384 = vadd.f32 %v382, 1e-05
          %v385 = vrsqrt.pop %v384
          %v386 = vmul.f32 %v383, %v385
          %vm387 = vcmask 7168
          %388 = vst.msk [vmem:[#allocation4] sm:$0xff] %vm387, %v386
          %v389 = vld [vmem:[%s3] sm:$0xff]
          %v390 = vmul.f32 %v368, %v386
          %v391 = vsub.f32 %v389, %v390
          %392 = vst.msk [vmem:[#allocation5] sm:$0xff] %vm387, %v391
        $region48: #{tpu_custom_call.1} parent=35 // pred_fallthru
          _
        // Predicated region
        $region49: #{tpu_custom_call.1} parent=35 // pred_check
          %p393 = pneg %p362
        $region50: #{tpu_custom_call.1} parent=35 // pred_check_branch
          %395 = sbr.rel (%p393) target = $region52
        $region51: #{tpu_custom_call.1} parent=35 // pred_region
          %s396 = smul.u32 %s23, 8
          %s397 = scalar_lea.vmem [#allocation2], %s396
          %v398 = vld [vmem:[%s397] sm:$0xff]
          %v399 = vld [vmem:[#allocation4] sm:$0xff]
          %401 = vset.pattern.permute.xlu0 0
          %402 = vperm.xlu0 %401, %v399
          %v403 = vpop.permute.xlu0 %402
          %v405 = vmul.f32 %v398, %v403
          %v406 = vld [vmem:[#allocation5] sm:$0xff]
          %408 = vset.pattern.permute.xlu0 0
          %409 = vperm.xlu0 %408, %v406
          %v410 = vpop.permute.xlu0 %409
          %v412 = vadd.f32 %v405, %v410
          %v413 = vadd.f32 %v412, 3.0
          %v414 = vmax.f32 %v413, 0.0
          %v415 = vmin.f32 %v414, 6.0
          %v416 = vmul.f32 %v412, %v415
          %v417 = vmul.f32 %v416, 0.16666667
          %vm418 = vcmask 130048
          %419 = vst.msk [vmem:[%s215] sm:$0xff] %vm418, %v417
          %421 = vrot.lane.b32.xlu0 %v417, 112
          %v422 = vpop.permute.xlu0 %421
          %s424 = scalar_lea.vmem %s215, 8 [#allocation6]
          %425 = vst.msk [vmem:[%s424] sm:$0xff] %vm418, %v422
        $region52: #{tpu_custom_call.1} parent=35 // pred_fallthru
          _
        %s426 = sand.u32 %s133, 1
        %s427 = scalar_lea.sflag [#allocation7], %s426
        %s428 = sand.u32 %s133, 1
        %s429 = smul.addr %s428, 16
        %s430 = scalar_lea.vmem [#allocation6], %s429
        // Predicated region
        $region53: #{tpu_custom_call.1} parent=35 // pred_check
          %p431 = pneg %p143
        $region54: #{tpu_custom_call.1} parent=35 // pred_check_branch
          %433 = sbr.rel (%p431) target = $region56
        $region55: #{tpu_custom_call.1} parent=35 // pred_region
          %s434 = smul.u32 %s23, %s22
          %s435 = smul.u32 2, %s434
          %s437 = ssub.s32 256, 256
          %438 = vsyncadd %s427, %s437
          %s439 = smul.addr %s435, 128
          %s440 = scalar_lea.hbm %s4, %s439
          %s441 = sshll.u32 %s430, 4
          %s442 = int_to_ptr.vmem [resolvable:$true] %s441
          %447 = dma.vmem_to_hbm [thread:$0]  %s442, 256, %s440, %s427, 128, 128, 8
        $region56: #{tpu_custom_call.1} parent=35 // pred_fallthru
          _
      $region36: #{tpu_custom_call.1} parent=5 // pred_fallthru
        _
      %p448 = scmp.le.s32.totalorder 2, %s13
      // Predicated region
      $region57: #{tpu_custom_call.1} parent=5 // pred_check
        %p449 = pneg %p448
      $region58: #{tpu_custom_call.1} parent=5 // pred_check_branch
        %451 = sbr.rel (%p449) target = $region60
      $region59: #{tpu_custom_call.1} parent=5 // pred_region
        %s452 = ssub.s32 %s13, 2
        // Predicated region
        $region61: #{tpu_custom_call.1} parent=59 // pred_check
          %p453 = pneg %p149
        $region62: #{tpu_custom_call.1} parent=59 // pred_check_branch
          %455 = sbr.rel (%p453) target = $region64
        $region63: #{tpu_custom_call.1} parent=59 // pred_region
          %s456 = sand.u32 %s134, 1
          %s457 = scalar_lea.sflag [#allocation7], %s456
          %s458 = sand.u32 %s134, 1
          %s459 = smul.addr %s458, 16
          %s460 = scalar_lea.vmem [#allocation6], %s459
          %461 = dma.done %s457, 256
        $region64: #{tpu_custom_call.1} parent=59 // pred_fallthru
          _
      $region60: #{tpu_custom_call.1} parent=5 // pred_fallthru
        _
    $region6: #{tpu_custom_call.1} parent=1 // loop_footer
      %s17 = sadd.s32 1, %s13
    $region7: #{tpu_custom_call.1} parent=1 // loop_footer_branch
      %12 = sbr.rel target = $region3
    $region8: #{tpu_custom_call.1} parent=1 // loop_exit
      _
    %462 = vsyncpa [#allocation7], 1
    %s463 = scalar_lea.sflag [#allocation7], 1
    %464 = vsyncpa %s463, 1

</llo_original>
